<compile_context>
chip_gen: v7x
topology: tpu7x:2x2x1
jax: 0.10.0
libtpu: 0.0.40
codegen_flags: <defaults>
</compile_context>

<pallas_src>
import functools
import math

import jax
import jax.numpy as jnp
from jax.experimental import pallas as pl
from jax.experimental.pallas import tpu as pltpu

LN_EPS = 1e-12              # DistilBERT LayerNorm eps
VMEM_LIMIT = 48 * 1024 * 1024


# ------------------------------ helpers ------------------------------------ #
def _layernorm(x, gamma, beta):
    mean = jnp.mean(x, axis=-1, keepdims=True)
    var = jnp.mean((x - mean) ** 2, axis=-1, keepdims=True)
    return (x - mean) * jax.lax.rsqrt(var + LN_EPS) * gamma + beta


def _pick_tile(n, pref=256):
    """Largest row tile <= pref that divides n (multiple of 8 when possible)."""
    if n <= pref:
        return n
    for t in range(pref, 7, -1):
        if n % t == 0 and t % 8 == 0:
            return t
    return n


def _cparams(sem):
    return pltpu.CompilerParams(dimension_semantics=sem,
                                vmem_limit_bytes=VMEM_LIMIT)


# ------------------------------ kernels ------------------------------------ #
def ln_kernel(x_ref, g_ref, b_ref, o_ref):
    o_ref[...] = _layernorm(x_ref[...], g_ref[...], b_ref[...])


def matmul_bias_kernel(x_ref, w_ref, b_ref, o_ref):
    acc = jnp.dot(x_ref[...].astype(jnp.bfloat16), w_ref[...],
                  preferred_element_type=jnp.float32)
    o_ref[...] = (acc + b_ref[...]).astype(o_ref.dtype)


def attn_core_kernel(q_ref, k_ref, v_ref, bias_ref, o_ref, *, scale):
    # q: (TQ, hd) bf16, k/v: (S, hd) bf16, bias: (1, S) f32 additive mask bias.
    q = q_ref[0]
    k = k_ref[0]
    v = v_ref[0]
    s = jnp.einsum('qd,kd->qk', q, k,
                   preferred_element_type=jnp.float32)          # (TQ, S) f32
    s = s * scale + bias_ref[0]                                  # additive mask bias
    s = s - jnp.max(s, axis=-1, keepdims=True)
    p = jnp.exp(s)
    p = p * pl.reciprocal(jnp.sum(p, axis=-1, keepdims=True), approx=True)
    ctx = jnp.dot(p.astype(jnp.bfloat16), v,
                  preferred_element_type=jnp.float32)            # (TQ, hd) f32
    o_ref[0] = ctx.astype(o_ref.dtype)


def attn_out_kernel(ctx_ref, x_ref, wo_ref, bo_ref, g_ref, b_ref, o_ref):
    # Single K=H output projection + residual + LayerNorm, fused.
    y = jnp.dot(ctx_ref[...], wo_ref[...], preferred_element_type=jnp.float32)
    y = y + bo_ref[...] + x_ref[...]
    o_ref[...] = _layernorm(y, g_ref[...], b_ref[...])


def ffn_kernel(x_ref, w1_ref, b1_ref, w2_ref, b2_ref, g_ref, b_ref, o_ref):
    xb = x_ref[...].astype(jnp.bfloat16)
    ff = jnp.dot(xb, w1_ref[...], preferred_element_type=jnp.float32) + b1_ref[...]
    # TODO(synk): HF DistilBERT uses exact erf-GELU; tanh approximation used here.
    ff = jax.nn.gelu(ff, approximate=True)
    y = jnp.dot(ff.astype(jnp.bfloat16), w2_ref[...],
                preferred_element_type=jnp.float32) + b2_ref[...]
    o_ref[...] = _layernorm(y + x_ref[...], g_ref[...], b_ref[...])


# ------------------------------ wrappers ------------------------------------ #
def layernorm_rows(x, gamma, beta):
    R, H = x.shape
    tm = _pick_tile(R)
    return pl.pallas_call(
        ln_kernel,
        out_shape=jax.ShapeDtypeStruct((R, H), jnp.float32),
        grid=(R // tm,),
        in_specs=[pl.BlockSpec((tm, H), lambda i: (i, 0)),
                  pl.BlockSpec((1, H), lambda i: (0, 0)),
                  pl.BlockSpec((1, H), lambda i: (0, 0))],
        out_specs=pl.BlockSpec((tm, H), lambda i: (i, 0)),
        compiler_params=_cparams(("parallel",)),
    )(x, gamma, beta)


def matmul_bias(x, w, b, out_dtype):
    R, K = x.shape
    N = w.shape[1]
    tm = _pick_tile(R)
    return pl.pallas_call(
        matmul_bias_kernel,
        out_shape=jax.ShapeDtypeStruct((R, N), out_dtype),
        grid=(R // tm,),
        in_specs=[pl.BlockSpec((tm, K), lambda i: (i, 0)),
                  pl.BlockSpec((K, N), lambda i: (0, 0)),   # resident weight
                  pl.BlockSpec((1, N), lambda i: (0, 0))],
        out_specs=pl.BlockSpec((tm, N), lambda i: (i, 0)),
        compiler_params=_cparams(("parallel",)),
    )(x, w, b)


def attention_core(q, k, v, mask_bias, n_heads, scale):
    BH, S, hd = q.shape
    tq = _pick_tile(S)
    kernel = functools.partial(attn_core_kernel, scale=scale)
    return pl.pallas_call(
        kernel,
        out_shape=jax.ShapeDtypeStruct((BH, S, hd), jnp.bfloat16),
        grid=(BH, S // tq),
        in_specs=[pl.BlockSpec((1, tq, hd), lambda bh, qi: (bh, qi, 0)),
                  pl.BlockSpec((1, S, hd), lambda bh, qi: (bh, 0, 0)),
                  pl.BlockSpec((1, S, hd), lambda bh, qi: (bh, 0, 0)),
                  pl.BlockSpec((1, 1, S), lambda bh, qi: (bh // n_heads, 0, 0))],
        out_specs=pl.BlockSpec((1, tq, hd), lambda bh, qi: (bh, qi, 0)),
        compiler_params=_cparams(("parallel", "parallel")),
    )(q, k, v, mask_bias)


def attn_output(ctx, x, wo, bo, g, be):
    R, H = x.shape
    tm = _pick_tile(R)
    return pl.pallas_call(
        attn_out_kernel,
        out_shape=jax.ShapeDtypeStruct((R, H), jnp.float32),
        grid=(R // tm,),
        in_specs=[pl.BlockSpec((tm, H), lambda i: (i, 0)),
                  pl.BlockSpec((tm, H), lambda i: (i, 0)),
                  pl.BlockSpec((H, H), lambda i: (0, 0)),
                  pl.BlockSpec((1, H), lambda i: (0, 0)),
                  pl.BlockSpec((1, H), lambda i: (0, 0)),
                  pl.BlockSpec((1, H), lambda i: (0, 0))],
        out_specs=pl.BlockSpec((tm, H), lambda i: (i, 0)),
        compiler_params=_cparams(("parallel",)),
    )(ctx, x, wo, bo, g, be)


def ffn_block(x, w1, b1, w2, b2, g, be):
    R, H = x.shape
    F = w1.shape[1]
    tm = _pick_tile(R)
    return pl.pallas_call(
        ffn_kernel,
        out_shape=jax.ShapeDtypeStruct((R, H), jnp.float32),
        grid=(R // tm,),
        in_specs=[pl.BlockSpec((tm, H), lambda i: (i, 0)),
                  pl.BlockSpec((H, F), lambda i: (0, 0)),
                  pl.BlockSpec((1, F), lambda i: (0, 0)),
                  pl.BlockSpec((F, H), lambda i: (0, 0)),
                  pl.BlockSpec((1, H), lambda i: (0, 0)),
                  pl.BlockSpec((1, H), lambda i: (0, 0)),
                  pl.BlockSpec((1, H), lambda i: (0, 0))],
        out_specs=pl.BlockSpec((tm, H), lambda i: (i, 0)),
        compiler_params=_cparams(("parallel",)),
    )(x, w1, b1, w2, b2, g, be)


# ------------------------------ params / forward ---------------------------- #
def init_params(key, vocab_size, max_pos, hidden, ffn_dim, n_layers):
    std = 0.02
    ks = jax.random.split(key, 2 + n_layers)
    params = {
        "word_emb": (jax.random.normal(ks[0], (vocab_size, hidden)) * std
                     ).astype(jnp.float32),
        "pos_emb": (jax.random.normal(ks[1], (max_pos, hidden)) * std
                    ).astype(jnp.float32),
        "emb_ln_g": jnp.ones((1, hidden), jnp.float32),
        "emb_ln_b": jnp.zeros((1, hidden), jnp.float32),
        "layers": [],
    }
    for l in range(n_layers):
        lk = jax.random.split(ks[2 + l], 6)
        wq = jax.random.normal(lk[0], (hidden, hidden)) * std
        wk = jax.random.normal(lk[1], (hidden, hidden)) * std
        wv = jax.random.normal(lk[2], (hidden, hidden)) * std
        layer = (
            jnp.concatenate([wq, wk, wv], axis=1).astype(jnp.bfloat16),      # Wqkv
            jnp.zeros((1, 3 * hidden), jnp.float32),                          # bqkv
            (jax.random.normal(lk[3], (hidden, hidden)) * std).astype(jnp.bfloat16),  # Wo
            jnp.zeros((1, hidden), jnp.float32),                              # bo
            jnp.ones((1, hidden), jnp.float32),                               # sa_ln g
            jnp.zeros((1, hidden), jnp.float32),                              # sa_ln b
            (jax.random.normal(lk[4], (hidden, ffn_dim)) * std).astype(jnp.bfloat16),  # W1
            jnp.zeros((1, ffn_dim), jnp.float32),                             # b1
            (jax.random.normal(lk[5], (ffn_dim, hidden)) * std).astype(jnp.bfloat16),  # W2
            jnp.zeros((1, hidden), jnp.float32),                              # b2
            jnp.ones((1, hidden), jnp.float32),                               # out_ln g
            jnp.zeros((1, hidden), jnp.float32),                              # out_ln b
        )
        params["layers"].append(layer)
    return params


def amazon_distilbert_forward(input_ids, attention_mask, params, n_heads):
    """Mirrors AmazonDistilBertBaseModel.forward: returns last_hidden_state (B,S,H)."""
    B, S = input_ids.shape
    H = params["word_emb"].shape[1]
    hd = H // n_heads
    R = B * S
    scale = 1.0 / math.sqrt(hd)

    if attention_mask is None:
        attention_mask = jnp.ones((B, S), jnp.int32)

    # plain-JAX glue: embedding gathers
    word = jnp.take(params["word_emb"], input_ids, axis=0)           # (B,S,H)
    pos = jnp.take(params["pos_emb"], jnp.arange(S), axis=0)[None]   # (1,S,H)
    emb = (word + pos).reshape(R, H).astype(jnp.float32)
    h = layernorm_rows(emb, params["emb_ln_g"], params["emb_ln_b"])  # (R,H) f32

    # additive attention bias precomputed once (1 = keep -> 0, 0 = pad -> -1e9)
    mask_bias = ((attention_mask.astype(jnp.float32) - 1.0) * 1e9).reshape(B, 1, S)

    def to_heads(t):   # (R, H) -> (B*n_heads, S, hd)
        return t.reshape(B, S, n_heads, hd).transpose(0, 2, 1, 3).reshape(
            B * n_heads, S, hd)

    # TODO(synk): per-layer weight prefetch (stacked-layer grid / cross-call DMA
    # futures) not implemented; each layer's weight load is a fresh HBM->VMEM DMA.
    for lp in params["layers"]:
        (wqkv, bqkv, wo, bo, g1, be1, w1, b1, w2, b2, g2, be2) = lp

        qkv = matmul_bias(h, wqkv, bqkv, jnp.bfloat16)               # (R, 3H) bf16
        q, k, v = jnp.split(qkv, 3, axis=1)

        ctx = attention_core(to_heads(q), to_heads(k), to_heads(v),
                             mask_bias, n_heads, scale)              # (B*nh, S, hd)
        ctx = ctx.reshape(B, n_heads, S, hd).transpose(0, 2, 1, 3).reshape(R, H)

        h = attn_output(ctx, h, wo, bo, g1, be1)                     # (R, H) f32
        h = ffn_block(h, w1, b1, w2, b2, g2, be2)                    # (R, H) f32

    return h.reshape(B, S, H)


# -------------------------------- main --------------------------------------- #
if __name__ == "__main__":
    # small DistilBERT-like config
    VOCAB, MAX_POS, HIDDEN, FFN, N_HEADS, N_LAYERS = 50, 16, 32, 64, 4, 2
    B, S = 2, 8

    key = jax.random.PRNGKey(0)
    k_param, k_ids = jax.random.split(key)
    params = init_params(k_param, VOCAB, MAX_POS, HIDDEN, FFN, N_LAYERS)

    input_ids = jax.random.randint(k_ids, (B, S), 0, VOCAB, dtype=jnp.int32)
    attention_mask = jnp.ones((B, S), jnp.int32).at[1, 6:].set(0)   # pad tail of sample 1

    out = amazon_distilbert_forward(input_ids, attention_mask, params, N_HEADS)
    out = jax.block_until_ready(out)
    assert out.shape == (B, S, HIDDEN) and out.dtype == jnp.float32
    assert bool(jnp.all(jnp.isfinite(out)))
    print("KERNEL_OK")
</pallas_src>

<mosaic_0001>
module attributes {stable_mosaic.version = 11 : i64} {
  func.func @ln_kernel(%arg0: i32, %arg1: memref<16x32xf32, #tpu.memory_space<vmem>>, %arg2: memref<1x32xf32, #tpu.memory_space<vmem>>, %arg3: memref<1x32xf32, #tpu.memory_space<vmem>>, %arg4: memref<16x32xf32, #tpu.memory_space<vmem>>) attributes {dimension_semantics = [#tpu.dimension_semantics<parallel>], iteration_bounds = array<i64: 1>, scalar_prefetch = 0 : i64, scratch_operands = 0 : i64, tpu.core_type = #tpu.core_type<tc>, window_params = [{transform_indices = @transform_0, window_bounds = array<i64: 16, 32>}, {pipeline_mode = #tpu.pipeline_mode<synchronous>, transform_indices = @transform_1, window_bounds = array<i64: 1, 32>}, {pipeline_mode = #tpu.pipeline_mode<synchronous>, transform_indices = @transform_2, window_bounds = array<i64: 1, 32>}, {transform_indices = @transform_3, window_bounds = array<i64: 16, 32>}]} {
    %c0 = arith.constant 0 : index
    %c0_0 = arith.constant 0 : index
    %0 = vector.load %arg1[%c0, %c0_0] : memref<16x32xf32, #tpu.memory_space<vmem>>, vector<16x32xf32>
    %c0_1 = arith.constant 0 : index
    %c0_2 = arith.constant 0 : index
    %1 = vector.load %arg2[%c0_1, %c0_2] : memref<1x32xf32, #tpu.memory_space<vmem>>, vector<1x32xf32>
    %c0_3 = arith.constant 0 : index
    %c0_4 = arith.constant 0 : index
    %2 = vector.load %arg3[%c0_3, %c0_4] : memref<1x32xf32, #tpu.memory_space<vmem>>, vector<1x32xf32>
    %cst = arith.constant dense<0.000000e+00> : vector<16xf32>
    %3 = vector.multi_reduction <add>, %0, %cst [1] : vector<16x32xf32> to vector<16xf32>
    %4 = vector.shape_cast %3 : vector<16xf32> to vector<16x1xf32>
    %cst_5 = arith.constant 3.200000e+01 : f32
    %5 = vector.broadcast %cst_5 : f32 to vector<16x1xf32>
    %6 = arith.divf %4, %5 : vector<16x1xf32>
    %7 = vector.broadcast %6 : vector<16x1xf32> to vector<16x32xf32>
    %8 = arith.subf %0, %7 : vector<16x32xf32>
    %9 = arith.mulf %8, %8 : vector<16x32xf32>
    %cst_6 = arith.constant dense<0.000000e+00> : vector<16xf32>
    %10 = vector.multi_reduction <add>, %9, %cst_6 [1] : vector<16x32xf32> to vector<16xf32>
    %11 = vector.shape_cast %10 : vector<16xf32> to vector<16x1xf32>
    %cst_7 = arith.constant 3.200000e+01 : f32
    %12 = vector.broadcast %cst_7 : f32 to vector<16x1xf32>
    %13 = arith.divf %11, %12 : vector<16x1xf32>
    %14 = vector.broadcast %6 : vector<16x1xf32> to vector<16x32xf32>
    %15 = arith.subf %0, %14 : vector<16x32xf32>
    %cst_8 = arith.constant 9.99999996E-13 : f32
    %16 = vector.broadcast %cst_8 : f32 to vector<16x1xf32>
    %17 = arith.addf %13, %16 : vector<16x1xf32>
    %18 = math.rsqrt %17 : vector<16x1xf32>
    %19 = vector.broadcast %18 : vector<16x1xf32> to vector<16x32xf32>
    %20 = arith.mulf %15, %19 : vector<16x32xf32>
    %21 = vector.broadcast %1 : vector<1x32xf32> to vector<16x32xf32>
    %22 = arith.mulf %20, %21 : vector<16x32xf32>
    %23 = vector.broadcast %2 : vector<1x32xf32> to vector<16x32xf32>
    %24 = arith.addf %22, %23 : vector<16x32xf32>
    %c0_9 = arith.constant 0 : index
    %c0_10 = arith.constant 0 : index
    %25 = vector.load %arg4[%c0_9, %c0_10] : memref<16x32xf32, #tpu.memory_space<vmem>>, vector<16x32xf32>
    tpu.vector_store %arg4[%c0_9, %c0_10], %24 {strides = array<i32>} : memref<16x32xf32, #tpu.memory_space<vmem>>, vector<16x32xf32>,
    return
  }
  func.func @transform_0(%arg0: i32) -> (i32, i32) {
    %c0_i32 = arith.constant 0 : i32
    %c0_i32_0 = arith.constant 0 : i32
    return %arg0, %c0_i32 : i32, i32
  }
  func.func @transform_1(%arg0: i32) -> (i32, i32) {
    %c0_i32 = arith.constant 0 : i32
    %c0_i32_0 = arith.constant 0 : i32
    %c0_i32_1 = arith.constant 0 : i32
    return %c0_i32, %c0_i32_0 : i32, i32
  }
  func.func @transform_2(%arg0: i32) -> (i32, i32) {
    %c0_i32 = arith.constant 0 : i32
    %c0_i32_0 = arith.constant 0 : i32
    %c0_i32_1 = arith.constant 0 : i32
    return %c0_i32, %c0_i32_0 : i32, i32
  }
  func.func @transform_3(%arg0: i32) -> (i32, i32) {
    %c0_i32 = arith.constant 0 : i32
    %c0_i32_0 = arith.constant 0 : i32
    return %arg0, %c0_i32 : i32, i32
  }
}

</mosaic_0001>

<llo_original>
// kernel: tpu_custom_call.1
$region0: #{tpu_custom_call.1}
  #allocation0 [shape = 'u32[]', space=smem, size = 0x4, offset = 0x4, fixed_abs, tag = 'smem constant byte address 0x4 - core index']
  #allocation1 [shape = 'u32[144,128]{1,0:T(1,128)}', space=vmem, size = 0x12000, scoped, tag = 'internal scratch']
  %s0 = inlined_call_operand.hbm [shape: f32[16,32], index: 0, kind: input, shape index: {}]
  %s1 = inlined_call_operand.vmem [shape: f32[1,32], index: 1, kind: input, shape index: {}]
  %s2 = inlined_call_operand.vmem [shape: f32[1,32], index: 2, kind: input, shape index: {}]
  %s3 = inlined_call_operand.hbm [shape: f32[16,32], index: 3, kind: output, shape index: {}]
  %s4 = sld [smem:[#allocation0]]
  $region26: #{tpu_custom_call.1} parent=0
    _
  %s6 = ssub.s32 1, %s4
  %s7 = scalar_select 0, %s6, %s4
  $region1: #{tpu_custom_call.1} parent=0
    #allocation2 [shape = 'u8[8192]{0}', space=vmem, size = 0x2000, scoped, tag = 'input window, operand 0, single buffered']
    #allocation3 [shape = 's32[1]{0}', space=sflag, size = 0x4, scoped, tag = 'scoped memory for tpu_custom_call.1']
    #allocation4 [shape = 's32[1]{0}', space=sflag, size = 0x4, scoped, tag = 'scoped memory for tpu_custom_call.1']
    #allocation5 [shape = 'u8[8192]{0}', space=vmem, size = 0x2000, scoped, tag = 'output window, operand 0, single buffered']
    %8 = vsyncpa [#allocation3], 0
    %9 = vsyncpa [#allocation4], 0
    // Predicated region
    $region2: #{tpu_custom_call.1} parent=1 // pred_check
      _
    $region3: #{tpu_custom_call.1} parent=1 // pred_check_branch
      %11 = sbr.rel (0) target = $region5
    $region4: #{tpu_custom_call.1} parent=1 // pred_region
      %s13 = ssub.s32 256, 256
      %14 = vsyncadd [#allocation3], %s13
      %s15 = sshll.u32 [#allocation2], 4
      %s16 = int_to_ptr.vmem [resolvable:$true] %s15
      %21 = dma.hbm_to_vmem [thread:$0]  %s0, 256, %s16, [#allocation3], 128, 128, 8
    $region5: #{tpu_custom_call.1} parent=1 // pred_fallthru
      _
    // Predicated region
    $region6: #{tpu_custom_call.1} parent=1 // pred_check
      _
    $region7: #{tpu_custom_call.1} parent=1 // pred_check_branch
      %23 = sbr.rel (0) target = $region9
    $region8: #{tpu_custom_call.1} parent=1 // pred_region
      _
    $region9: #{tpu_custom_call.1} parent=1 // pred_fallthru
      _
    // Predicated region
    $region10: #{tpu_custom_call.1} parent=1 // pred_check
      _
    $region11: #{tpu_custom_call.1} parent=1 // pred_check_branch
      %25 = sbr.rel (0) target = $region13
    $region12: #{tpu_custom_call.1} parent=1 // pred_region
      _
    $region13: #{tpu_custom_call.1} parent=1 // pred_fallthru
      _
    // Predicated region
    $region14: #{tpu_custom_call.1} parent=1 // pred_check
      _
    $region15: #{tpu_custom_call.1} parent=1 // pred_check_branch
      %27 = sbr.rel (0) target = $region17
    $region16: #{tpu_custom_call.1} parent=1 // pred_region
      %28 = dma.done [#allocation3], 256
    $region17: #{tpu_custom_call.1} parent=1 // pred_fallthru
      _
    %v29 = vld [vmem:[#allocation2] sm:$0xff]
    %v30 = vld [vmem:[#allocation2 + $0x8] sm:$0xff]
    %v31 = vld [vmem:[%s1] sm:$0x1]
    %v32 = vld [vmem:[%s2] sm:$0x1]
    %vm33 = vcmask 261120
    %v34 = vsel %vm33, %v29, 0.0
    %35 = vadd.xlane.f32.xlu0 %v34
    %v36 = vpop.xlane.xlu0 %35
    %v37 = vsel %vm33, %v30, 0.0
    %38 = vadd.xlane.f32.xlu0 %v37
    %v39 = vpop.xlane.xlu0 %38
    %v40 = vrcp.pop 32.0
    %v41 = vmul.f32 %v36, %v40
    %v42 = vmul.f32 %v39, %v40
    %v43 = vsub.f32 %v29, %v41
    %v44 = vsub.f32 %v30, %v42
    %v45 = vmul.f32 %v43, %v43
    %v46 = vmul.f32 %v44, %v44
    %v47 = vsel %vm33, %v45, 0.0
    %48 = vadd.xlane.f32.xlu0 %v47
    %v49 = vpop.xlane.xlu0 %48
    %v50 = vsel %vm33, %v46, 0.0
    %51 = vadd.xlane.f32.xlu0 %v50
    %v52 = vpop.xlane.xlu0 %51
    %v53 = vmul.f32 %v49, %v40
    %v54 = vmul.f32 %v52, %v40
    %v55 = vadd.f32 %v53, 1e-12
    %v56 = vadd.f32 %v54, 1e-12
    %v57 = vrsqrt.pop %v55
    %v58 = vrsqrt.pop %v56
    %v59 = vmul.f32 %v43, %v57
    %v60 = vmul.f32 %v44, %v58
    %v62 = vlaneseq
    %v63 = vshrl.u32 %v62, 7
    %v64 = vsub.s32 0, %v63
    %v65 = vrot.slane %v31, %v64
    %v67 = vmul.f32 %v59, %v65
    %v68 = vmul.f32 %v60, %v65
    %v70 = vlaneseq
    %v71 = vshrl.u32 %v70, 7
    %v72 = vsub.s32 0, %v71
    %v73 = vrot.slane %v32, %v72
    %v75 = vadd.f32 %v67, %v73
    %v76 = vadd.f32 %v68, %v73
    %77 = vst.msk [vmem:[#allocation5] sm:$0xff] %vm33, %v75
    %78 = vst.msk [vmem:[#allocation5 + $0x8] sm:$0xff] %vm33, %v76
    // Predicated region
    $region18: #{tpu_custom_call.1} parent=1 // pred_check
      _
    $region19: #{tpu_custom_call.1} parent=1 // pred_check_branch
      %80 = sbr.rel (0) target = $region21
    $region20: #{tpu_custom_call.1} parent=1 // pred_region
      %s82 = ssub.s32 256, 256
      %83 = vsyncadd [#allocation4], %s82
      %s84 = sshll.u32 [#allocation5], 4
      %s85 = int_to_ptr.vmem [resolvable:$true] %s84
      %90 = dma.vmem_to_hbm [thread:$0]  %s85, 256, %s3, [#allocation4], 128, 128, 8
    $region21: #{tpu_custom_call.1} parent=1 // pred_fallthru
      _
    // Predicated region
    $region22: #{tpu_custom_call.1} parent=1 // pred_check
      _
    $region23: #{tpu_custom_call.1} parent=1 // pred_check_branch
      %92 = sbr.rel (0) target = $region25
    $region24: #{tpu_custom_call.1} parent=1 // pred_region
      %93 = dma.done [#allocation4], 256
    $region25: #{tpu_custom_call.1} parent=1 // pred_fallthru
      _
    %94 = vsyncpa [#allocation3], 1
    %95 = vsyncpa [#allocation4], 1

</llo_original>
